<compile_context>
chip_gen: v5e
topology: v5e:2x2
jax: 0.10.0
libtpu: 0.0.40
codegen_flags: <defaults>
</compile_context>

<pallas_src>
from functools import partial

import jax
import jax.numpy as jnp
from jax.experimental import pallas as pl
from jax.experimental.pallas import tpu as pltpu

_LANE = 128
_SUBLANE = 8
_INV_SQRT2 = 0.7071067811865476


def _round_up(x, m):
    return ((x + m - 1) // m) * m


def _mlp_kernel(*refs, num_layers):
    """refs = (x_ref, w0, b0, w1, b1, ..., w{L-1}, b{L-1}, o_ref).

    x block: [tm, K0p]; w_l: [K_lp, N_lp] (padded, VMEM-resident); b_l: [1, N_lp].
    The whole layer stack runs on the current M tile; activations stay in VMEM.
    """
    x_ref = refs[0]
    o_ref = refs[-1]

    h = x_ref[...].astype(jnp.float32)
    for l in range(num_layers):
        w = refs[1 + 2 * l][...].astype(jnp.float32)
        b = refs[2 + 2 * l][...].astype(jnp.float32)        # [1, N_lp] broadcast over M
        h = jnp.dot(h, w, preferred_element_type=jnp.float32) + b
        if l < num_layers - 1:
            # nn.GELU() default: exact erf formulation.
            h = 0.5 * h * (1.0 + jax.lax.erf(h * _INV_SQRT2))
    o_ref[...] = h.astype(o_ref.dtype)


def init_mlp_params(key, input_dim, hidden_dim, output_dim, num_layers):
    """Init mirroring nn.Linear (U(-1/sqrt(in), 1/sqrt(in))).

    Weights are stored pre-transposed as [in, out] so the forward pass never
    materializes a transpose.
    """
    h = [hidden_dim] * (num_layers - 1)
    dims = list(zip([input_dim] + h, h + [output_dim]))      # (in, out) per layer
    params = []
    for (n_in, n_out) in dims:
        key, kw, kb = jax.random.split(key, 3)
        bound = 1.0 / jnp.sqrt(jnp.float32(n_in))
        w = jax.random.uniform(kw, (n_out, n_in), jnp.float32, -bound, bound)
        b = jax.random.uniform(kb, (n_out,), jnp.float32, -bound, bound)
        params.append((w.T, b))                              # store [K, N] once
    return params


def pack_mlp_params(params):
    """Zero-pad each [K, N] weight / [N] bias to 128-multiples, ONCE."""
    packed = []
    dims = [params[0][0].shape[0]] + [w.shape[1] for (w, _) in params]
    pads = [_round_up(d, _LANE) for d in dims]
    for l, (w, b) in enumerate(params):
        K, N = w.shape
        Kp, Np = pads[l], pads[l + 1]
        wp = jnp.zeros((Kp, Np), jnp.float32).at[:K, :N].set(w)
        bp = jnp.zeros((1, Np), jnp.float32).at[0, :N].set(b)
        packed.append((wp, bp))
    return packed, dims, pads


def mlp_forward(x, packed_params, dims, pads, *, tm_max=512):
    """x: [..., input_dim].  Fused MLP forward in one pallas_call."""
    lead_shape = x.shape[:-1]
    in_dim, out_dim = dims[0], dims[-1]
    num_layers = len(packed_params)

    xf = x.reshape(-1, in_dim)
    M = xf.shape[0]

    # M tiling: sublane-aligned, capped, and padded to an exact multiple of tm.
    m8 = _round_up(max(M, _SUBLANE), _SUBLANE)
    tm = min(tm_max, m8)
    M_pad = _round_up(m8, tm)

    K0p, Nlp = pads[0], pads[-1]
    xp = jnp.zeros((M_pad, K0p), x.dtype).at[:M, :in_dim].set(xf)

    inputs = [xp]
    in_specs = [pl.BlockSpec((tm, K0p), lambda i: (i, 0))]
    for l, (wp, bp) in enumerate(packed_params):
        Kp, Np = wp.shape
        inputs += [wp, bp]
        # Constant index_map -> weights/bias loaded once, VMEM-resident across M tiles.
        in_specs += [
            pl.BlockSpec((Kp, Np), lambda i: (0, 0)),
            pl.BlockSpec((1, Np), lambda i: (0, 0)),
        ]

    flops = 2 * M_pad * sum(pads[l] * pads[l + 1] for l in range(num_layers))
    transcendentals = M_pad * sum(pads[l + 1] for l in range(num_layers - 1))
    bytes_accessed = 4 * (
        M_pad * K0p
        + sum(pads[l] * pads[l + 1] + pads[l + 1] for l in range(num_layers))
        + M_pad * Nlp
    )

    out = pl.pallas_call(
        partial(_mlp_kernel, num_layers=num_layers),
        out_shape=jax.ShapeDtypeStruct((M_pad, Nlp), x.dtype),
        grid=(M_pad // tm,),
        in_specs=in_specs,
        out_specs=pl.BlockSpec((tm, Nlp), lambda i: (i, 0)),
        compiler_params=pltpu.CompilerParams(
            # M tiles are independent -> shard across both TCs on v7x.
            dimension_semantics=("parallel",),
            # Sized against v7x's 64 MiB VMEM per TC (also valid on v5e/v6e).
            vmem_limit_bytes=48 * 1024 * 1024,
        ),
        cost_estimate=pl.CostEstimate(
            flops=flops,
            transcendentals=transcendentals,
            bytes_accessed=bytes_accessed,
        ),
    )(*inputs)

    # Slice the lane-padded output back to the true output_dim.
    return out[:M, :out_dim].reshape(*lead_shape, out_dim)


def mlp_reference(x, params):
    """Pure-JAX reference matching the PyTorch forward (weights stored [K, N])."""
    num_layers = len(params)
    for i, (w, b) in enumerate(params):
        x = x @ w + b
        if i < num_layers - 1:
            x = 0.5 * x * (1.0 + jax.lax.erf(x / jnp.sqrt(2.0)))
    return x


if __name__ == "__main__":
    key = jax.random.PRNGKey(0)
    kx, kp = jax.random.split(key)

    input_dim, hidden_dim, output_dim, num_layers = 32, 64, 16, 3
    # Batch [2, 8] of vectors of size input_dim (Linear accepts arbitrary leading dims).
    x = jax.random.normal(kx, (2, 8, input_dim), jnp.float32)

    params = init_mlp_params(kp, input_dim, hidden_dim, output_dim, num_layers)
    packed_params, dims, pads = pack_mlp_params(params)

    out = mlp_forward(x, packed_params, dims, pads)
    out = jax.block_until_ready(out)

    ref = mlp_reference(x, params)
    assert out.shape == (2, 8, output_dim), out.shape
    assert jnp.allclose(out, ref, atol=1e-5, rtol=1e-5), float(jnp.abs(out - ref).max())

    print("KERNEL_OK")
</pallas_src>

<mosaic_0001>
module attributes {stable_mosaic.version = 11 : i64} {
  func.func @_mlp_kernel(%arg0: i32, %arg1: memref<16x128xf32, #tpu.memory_space<vmem>>, %arg2: memref<128x128xf32, #tpu.memory_space<vmem>>, %arg3: memref<1x128xf32, #tpu.memory_space<vmem>>, %arg4: memref<128x128xf32, #tpu.memory_space<vmem>>, %arg5: memref<1x128xf32, #tpu.memory_space<vmem>>, %arg6: memref<128x128xf32, #tpu.memory_space<vmem>>, %arg7: memref<1x128xf32, #tpu.memory_space<vmem>>, %arg8: memref<16x128xf32, #tpu.memory_space<vmem>>) attributes {dimension_semantics = [#tpu.dimension_semantics<parallel>], iteration_bounds = array<i64: 1>, scalar_prefetch = 0 : i64, scratch_operands = 0 : i64, tpu.core_type = #tpu.core_type<tc>, window_params = [{transform_indices = @transform_0, window_bounds = array<i64: 16, 128>}, {pipeline_mode = #tpu.pipeline_mode<synchronous>, transform_indices = @transform_1, window_bounds = array<i64: 128, 128>}, {pipeline_mode = #tpu.pipeline_mode<synchronous>, transform_indices = @transform_2, window_bounds = array<i64: 1, 128>}, {pipeline_mode = #tpu.pipeline_mode<synchronous>, transform_indices = @transform_3, window_bounds = array<i64: 128, 128>}, {pipeline_mode = #tpu.pipeline_mode<synchronous>, transform_indices = @transform_4, window_bounds = array<i64: 1, 128>}, {pipeline_mode = #tpu.pipeline_mode<synchronous>, transform_indices = @transform_5, window_bounds = array<i64: 128, 128>}, {pipeline_mode = #tpu.pipeline_mode<synchronous>, transform_indices = @transform_6, window_bounds = array<i64: 1, 128>}, {transform_indices = @transform_7, window_bounds = array<i64: 16, 128>}]} {
    %c0 = arith.constant 0 : index
    %c0_0 = arith.constant 0 : index
    %0 = vector.load %arg1[%c0, %c0_0] : memref<16x128xf32, #tpu.memory_space<vmem>>, vector<16x128xf32>
    %c0_1 = arith.constant 0 : index
    %c0_2 = arith.constant 0 : index
    %1 = vector.load %arg2[%c0_1, %c0_2] : memref<128x128xf32, #tpu.memory_space<vmem>>, vector<128x128xf32>
    %c0_3 = arith.constant 0 : index
    %c0_4 = arith.constant 0 : index
    %2 = vector.load %arg3[%c0_3, %c0_4] : memref<1x128xf32, #tpu.memory_space<vmem>>, vector<1x128xf32>
    %cst = arith.constant dense<0.000000e+00> : vector<16x128xf32>
    %3 = tpu.matmul %0, %1, %cst {dimension_numbers = #tpu.dot_dimension_numbers<[1], [0], [0], [1], [0, 0, 1, 1], [], []>} : vector<16x128xf32>, vector<128x128xf32>, vector<16x128xf32> -> vector<16x128xf32>
    %4 = vector.broadcast %2 : vector<1x128xf32> to vector<16x128xf32>
    %5 = arith.addf %3, %4 : vector<16x128xf32>
    %cst_5 = arith.constant 5.000000e-01 : f32
    %6 = vector.broadcast %cst_5 : f32 to vector<16x128xf32>
    %7 = arith.mulf %6, %5 : vector<16x128xf32>
    %cst_6 = arith.constant 0.707106769 : f32
    %8 = vector.broadcast %cst_6 : f32 to vector<16x128xf32>
    %9 = arith.mulf %5, %8 : vector<16x128xf32>
    %10 = math.erf %9 : vector<16x128xf32>
    %cst_7 = arith.constant 1.000000e+00 : f32
    %11 = vector.broadcast %cst_7 : f32 to vector<16x128xf32>
    %12 = arith.addf %11, %10 : vector<16x128xf32>
    %13 = arith.mulf %7, %12 : vector<16x128xf32>
    %c0_8 = arith.constant 0 : index
    %c0_9 = arith.constant 0 : index
    %14 = vector.load %arg4[%c0_8, %c0_9] : memref<128x128xf32, #tpu.memory_space<vmem>>, vector<128x128xf32>
    %c0_10 = arith.constant 0 : index
    %c0_11 = arith.constant 0 : index
    %15 = vector.load %arg5[%c0_10, %c0_11] : memref<1x128xf32, #tpu.memory_space<vmem>>, vector<1x128xf32>
    %cst_12 = arith.constant dense<0.000000e+00> : vector<16x128xf32>
    %16 = tpu.matmul %13, %14, %cst_12 {dimension_numbers = #tpu.dot_dimension_numbers<[1], [0], [0], [1], [0, 0, 1, 1], [], []>} : vector<16x128xf32>, vector<128x128xf32>, vector<16x128xf32> -> vector<16x128xf32>
    %17 = vector.broadcast %15 : vector<1x128xf32> to vector<16x128xf32>
    %18 = arith.addf %16, %17 : vector<16x128xf32>
    %cst_13 = arith.constant 5.000000e-01 : f32
    %19 = vector.broadcast %cst_13 : f32 to vector<16x128xf32>
    %20 = arith.mulf %19, %18 : vector<16x128xf32>
    %cst_14 = arith.constant 0.707106769 : f32
    %21 = vector.broadcast %cst_14 : f32 to vector<16x128xf32>
    %22 = arith.mulf %18, %21 : vector<16x128xf32>
    %23 = math.erf %22 : vector<16x128xf32>
    %cst_15 = arith.constant 1.000000e+00 : f32
    %24 = vector.broadcast %cst_15 : f32 to vector<16x128xf32>
    %25 = arith.addf %24, %23 : vector<16x128xf32>
    %26 = arith.mulf %20, %25 : vector<16x128xf32>
    %c0_16 = arith.constant 0 : index
    %c0_17 = arith.constant 0 : index
    %27 = vector.load %arg6[%c0_16, %c0_17] : memref<128x128xf32, #tpu.memory_space<vmem>>, vector<128x128xf32>
    %c0_18 = arith.constant 0 : index
    %c0_19 = arith.constant 0 : index
    %28 = vector.load %arg7[%c0_18, %c0_19] : memref<1x128xf32, #tpu.memory_space<vmem>>, vector<1x128xf32>
    %cst_20 = arith.constant dense<0.000000e+00> : vector<16x128xf32>
    %29 = tpu.matmul %26, %27, %cst_20 {dimension_numbers = #tpu.dot_dimension_numbers<[1], [0], [0], [1], [0, 0, 1, 1], [], []>} : vector<16x128xf32>, vector<128x128xf32>, vector<16x128xf32> -> vector<16x128xf32>
    %30 = vector.broadcast %28 : vector<1x128xf32> to vector<16x128xf32>
    %31 = arith.addf %29, %30 : vector<16x128xf32>
    %c0_21 = arith.constant 0 : index
    %c0_22 = arith.constant 0 : index
    %32 = vector.load %arg8[%c0_21, %c0_22] : memref<16x128xf32, #tpu.memory_space<vmem>>, vector<16x128xf32>
    tpu.vector_store %arg8[%c0_21, %c0_22], %31 {strides = array<i32>} : memref<16x128xf32, #tpu.memory_space<vmem>>, vector<16x128xf32>,
    return
  }
  func.func @transform_0(%arg0: i32) -> (i32, i32) {
    %c0_i32 = arith.constant 0 : i32
    %c0_i32_0 = arith.constant 0 : i32
    return %arg0, %c0_i32 : i32, i32
  }
  func.func @transform_1(%arg0: i32) -> (i32, i32) {
    %c0_i32 = arith.constant 0 : i32
    %c0_i32_0 = arith.constant 0 : i32
    %c0_i32_1 = arith.constant 0 : i32
    return %c0_i32, %c0_i32_0 : i32, i32
  }
  func.func @transform_2(%arg0: i32) -> (i32, i32) {
    %c0_i32 = arith.constant 0 : i32
    %c0_i32_0 = arith.constant 0 : i32
    %c0_i32_1 = arith.constant 0 : i32
    return %c0_i32, %c0_i32_0 : i32, i32
  }
  func.func @transform_3(%arg0: i32) -> (i32, i32) {
    %c0_i32 = arith.constant 0 : i32
    %c0_i32_0 = arith.constant 0 : i32
    %c0_i32_1 = arith.constant 0 : i32
    return %c0_i32, %c0_i32_0 : i32, i32
  }
  func.func @transform_4(%arg0: i32) -> (i32, i32) {
    %c0_i32 = arith.constant 0 : i32
    %c0_i32_0 = arith.constant 0 : i32
    %c0_i32_1 = arith.constant 0 : i32
    return %c0_i32, %c0_i32_0 : i32, i32
  }
  func.func @transform_5(%arg0: i32) -> (i32, i32) {
    %c0_i32 = arith.constant 0 : i32
    %c0_i32_0 = arith.constant 0 : i32
    %c0_i32_1 = arith.constant 0 : i32
    return %c0_i32, %c0_i32_0 : i32, i32
  }
  func.func @transform_6(%arg0: i32) -> (i32, i32) {
    %c0_i32 = arith.constant 0 : i32
    %c0_i32_0 = arith.constant 0 : i32
    %c0_i32_1 = arith.constant 0 : i32
    return %c0_i32, %c0_i32_0 : i32, i32
  }
  func.func @transform_7(%arg0: i32) -> (i32, i32) {
    %c0_i32 = arith.constant 0 : i32
    %c0_i32_0 = arith.constant 0 : i32
    return %arg0, %c0_i32 : i32, i32
  }
}

</mosaic_0001>

<llo_original>
// kernel: tpu_custom_call.1
$region0: #{tpu_custom_call.1}
  #allocation0 [shape = 'u32[]', space=smem, size = 0x4, offset = 0x4, fixed_abs, tag = 'smem constant byte address 0x4 - core index']
  #allocation1 [shape = 'u32[72,128]{1,0:T(1,128)}', space=vmem, size = 0x9000, scoped, tag = 'internal scratch']
  %s0 = inlined_call_operand.hbm [shape: f32[16,128], index: 0, kind: input, shape index: {}]
  %s1 = inlined_call_operand.hbm [shape: f32[128,128], index: 1, kind: input, shape index: {}]
  %s2 = inlined_call_operand.vmem [shape: f32[1,128], index: 2, kind: input, shape index: {}]
  %s3 = inlined_call_operand.hbm [shape: f32[128,128], index: 3, kind: input, shape index: {}]
  %s4 = inlined_call_operand.vmem [shape: f32[1,128], index: 4, kind: input, shape index: {}]
  %s5 = inlined_call_operand.hbm [shape: f32[128,128], index: 5, kind: input, shape index: {}]
  %s6 = inlined_call_operand.vmem [shape: f32[1,128], index: 6, kind: input, shape index: {}]
  %s7 = inlined_call_operand.hbm [shape: f32[16,128], index: 7, kind: output, shape index: {}]
  %s8 = sld [smem:[#allocation0]]
  $region54: #{tpu_custom_call.1} parent=0
    _
  %s10 = ssub.s32 1, %s8
  %s11 = scalar_select 0, %s10, %s8
  $region1: #{tpu_custom_call.1} parent=0
    #allocation2 [shape = 'u8[8192]{0}', space=vmem, size = 0x2000, scoped, tag = 'input window, operand 0, single buffered']
    #allocation3 [shape = 's32[1]{0}', space=sflag, size = 0x4, scoped, tag = 'scoped memory for tpu_custom_call.1']
    #allocation4 [shape = 's32[1]{0}', space=sflag, size = 0x4, scoped, tag = 'scoped memory for tpu_custom_call.1']
    #allocation5 [shape = 'u8[65536]{0}', space=vmem, size = 0x10000, scoped, tag = 'input window, operand 1, single buffered']
    #allocation6 [shape = 's32[1]{0}', space=sflag, size = 0x4, scoped, tag = 'scoped memory for tpu_custom_call.1']
    #allocation7 [shape = 'u8[65536]{0}', space=vmem, size = 0x10000, scoped, tag = 'input window, operand 3, single buffered']
    #allocation8 [shape = 'u8[65536]{0}', space=vmem, size = 0x10000, scoped, tag = 'input window, operand 5, single buffered']
    #allocation9 [shape = 's32[1]{0}', space=sflag, size = 0x4, scoped, tag = 'scoped memory for tpu_custom_call.1']
    #allocation10 [shape = 'u8[8192]{0}', space=vmem, size = 0x2000, scoped, tag = 'output window, operand 0, single buffered']
    %12 = vsyncpa [#allocation3], 0
    %13 = vsyncpa [#allocation6], 0
    %14 = vsyncpa [#allocation9], 0
    %15 = vsyncpa [#allocation4], 0
    // Predicated region
    $region2: #{tpu_custom_call.1} parent=1 // pred_check
      _
    $region3: #{tpu_custom_call.1} parent=1 // pred_check_branch
      %17 = sbr.rel (0) target = $region5
    $region4: #{tpu_custom_call.1} parent=1 // pred_region
      %19 = vsyncadd [#allocation3], 0
      %s20 = sshll.u32 %s0, 4
      %s21 = int_to_ptr.hbm [resolvable:$true] %s20
      %s22 = sshll.u32 [#allocation2], 4
      %s23 = int_to_ptr.vmem [resolvable:$true] %s22
      %28 = dma.hbm_to_vmem [thread:$0]  %s21, 256, %s23, [#allocation3], 128, 128, 8
    $region5: #{tpu_custom_call.1} parent=1 // pred_fallthru
      _
    // Predicated region
    $region6: #{tpu_custom_call.1} parent=1 // pred_check
      _
    $region7: #{tpu_custom_call.1} parent=1 // pred_check_branch
      %30 = sbr.rel (0) target = $region9
    $region8: #{tpu_custom_call.1} parent=1 // pred_region
      %32 = vsyncadd [#allocation6], 0
      %s33 = sshll.u32 %s1, 4
      %s34 = int_to_ptr.hbm [resolvable:$true] %s33
      %s35 = sshll.u32 [#allocation5], 4
      %s36 = int_to_ptr.vmem [resolvable:$true] %s35
      %41 = dma.hbm_to_vmem [thread:$0]  %s34, 2048, %s36, [#allocation6], 128, 128, 8
    $region9: #{tpu_custom_call.1} parent=1 // pred_fallthru
      _
    // Predicated region
    $region10: #{tpu_custom_call.1} parent=1 // pred_check
      _
    $region11: #{tpu_custom_call.1} parent=1 // pred_check_branch
      %43 = sbr.rel (0) target = $region13
    $region12: #{tpu_custom_call.1} parent=1 // pred_region
      _
    $region13: #{tpu_custom_call.1} parent=1 // pred_fallthru
      _
    // Predicated region
    $region14: #{tpu_custom_call.1} parent=1 // pred_check
      _
    $region15: #{tpu_custom_call.1} parent=1 // pred_check_branch
      %45 = sbr.rel (0) target = $region17
    $region16: #{tpu_custom_call.1} parent=1 // pred_region
      %47 = vsyncadd [#allocation6], 0
      %s48 = sshll.u32 %s3, 4
      %s49 = int_to_ptr.hbm [resolvable:$true] %s48
      %s50 = sshll.u32 [#allocation7], 4
      %s51 = int_to_ptr.vmem [resolvable:$true] %s50
      %56 = dma.hbm_to_vmem [thread:$0]  %s49, 2048, %s51, [#allocation6], 128, 128, 8
    $region17: #{tpu_custom_call.1} parent=1 // pred_fallthru
      _
    // Predicated region
    $region18: #{tpu_custom_call.1} parent=1 // pred_check
      _
    $region19: #{tpu_custom_call.1} parent=1 // pred_check_branch
      %58 = sbr.rel (0) target = $region21
    $region20: #{tpu_custom_call.1} parent=1 // pred_region
      _
    $region21: #{tpu_custom_call.1} parent=1 // pred_fallthru
      _
    // Predicated region
    $region22: #{tpu_custom_call.1} parent=1 // pred_check
      _
    $region23: #{tpu_custom_call.1} parent=1 // pred_check_branch
      %60 = sbr.rel (0) target = $region25
    $region24: #{tpu_custom_call.1} parent=1 // pred_region
      %62 = vsyncadd [#allocation9], 0
      %s63 = sshll.u32 %s5, 4
      %s64 = int_to_ptr.hbm [resolvable:$true] %s63
      %s65 = sshll.u32 [#allocation8], 4
      %s66 = int_to_ptr.vmem [resolvable:$true] %s65
      %71 = dma.hbm_to_vmem [thread:$0]  %s64, 2048, %s66, [#allocation9], 128, 128, 8
    $region25: #{tpu_custom_call.1} parent=1 // pred_fallthru
      _
    // Predicated region
    $region26: #{tpu_custom_call.1} parent=1 // pred_check
      _
    $region27: #{tpu_custom_call.1} parent=1 // pred_check_branch
      %73 = sbr.rel (0) target = $region29
    $region28: #{tpu_custom_call.1} parent=1 // pred_region
      _
    $region29: #{tpu_custom_call.1} parent=1 // pred_fallthru
      _
    // Predicated region
    $region30: #{tpu_custom_call.1} parent=1 // pred_check
      _
    $region31: #{tpu_custom_call.1} parent=1 // pred_check_branch
      %75 = sbr.rel (0) target = $region33
    $region32: #{tpu_custom_call.1} parent=1 // pred_region
      %77 = dma.done [#allocation3], 256
    $region33: #{tpu_custom_call.1} parent=1 // pred_fallthru
      _
    // Predicated region
    $region34: #{tpu_custom_call.1} parent=1 // pred_check
      _
    $region35: #{tpu_custom_call.1} parent=1 // pred_check_branch
      %79 = sbr.rel (0) target = $region37
    $region36: #{tpu_custom_call.1} parent=1 // pred_region
      %81 = dma.done [#allocation6], 2048
    $region37: #{tpu_custom_call.1} parent=1 // pred_fallthru
      _
    // Predicated region
    $region38: #{tpu_custom_call.1} parent=1 // pred_check
      _
    $region39: #{tpu_custom_call.1} parent=1 // pred_check_branch
      %83 = sbr.rel (0) target = $region41
    $region40: #{tpu_custom_call.1} parent=1 // pred_region
      %85 = dma.done [#allocation6], 2048
    $region41: #{tpu_custom_call.1} parent=1 // pred_fallthru
      _
    // Predicated region
    $region42: #{tpu_custom_call.1} parent=1 // pred_check
      _
    $region43: #{tpu_custom_call.1} parent=1 // pred_check_branch
      %87 = sbr.rel (0) target = $region45
    $region44: #{tpu_custom_call.1} parent=1 // pred_region
      %89 = dma.done [#allocation9], 2048
    $region45: #{tpu_custom_call.1} parent=1 // pred_fallthru
      _
    %v90 = vld [vmem:[#allocation2] sm:$0xff]
    %v91 = vld [vmem:[#allocation2 + $0x8] sm:$0xff]
    %v92 = vld [vmem:[#allocation5] sm:$0xff]
    %v93 = vld [vmem:[#allocation5 + $0x8] sm:$0xff]
    %v94 = vld [vmem:[#allocation5 + $0x10] sm:$0xff]
    %v95 = vld [vmem:[#allocation5 + $0x18] sm:$0xff]
    %v96 = vld [vmem:[#allocation5 + $0x20] sm:$0xff]
    %v97 = vld [vmem:[#allocation5 + $0x28] sm:$0xff]
    %v98 = vld [vmem:[#allocation5 + $0x30] sm:$0xff]
    %v99 = vld [vmem:[#allocation5 + $0x38] sm:$0xff]
    %v100 = vld [vmem:[#allocation5 + $0x40] sm:$0xff]
    %v101 = vld [vmem:[#allocation5 + $0x48] sm:$0xff]
    %v102 = vld [vmem:[#allocation5 + $0x50] sm:$0xff]
    %v103 = vld [vmem:[#allocation5 + $0x58] sm:$0xff]
    %v104 = vld [vmem:[#allocation5 + $0x60] sm:$0xff]
    %v105 = vld [vmem:[#allocation5 + $0x68] sm:$0xff]
    %v106 = vld [vmem:[#allocation5 + $0x70] sm:$0xff]
    %v107 = vld [vmem:[#allocation5 + $0x78] sm:$0xff]
    %v108 = vld [vmem:[%s2] sm:$0x1]
    %v110 = vperm.slane %v108, 0
    %112 = vmatpush.msra.mxu0 %v107
    %113 = vmatpush.msra.mxu0 %v106
    %114 = vmatpush.msra.mxu0 %v105
    %115 = vmatpush.msra.mxu0 %v104
    %116 = vmatpush.msra.mxu0 %v103
    %117 = vmatpush.msra.mxu0 %v102
    %118 = vmatpush.msra.mxu0 %v101
    %119 = vmatpush.msra.mxu0 %v100
    %120 = vmatpush.msra.mxu0 %v99
    %121 = vmatpush.msra.mxu0 %v98
    %122 = vmatpush.msra.mxu0 %v97
    %123 = vmatpush.msra.mxu0 %v96
    %124 = vmatpush.msra.mxu0 %v95
    %125 = vmatpush.msra.mxu0 %v94
    %126 = vmatpush.msra.mxu0 %v93
    %127 = vmatpush.msra.mxu0 %v92
    %128 = vmatmul.f32.gmra.mxu0 %v90
    %v129 = vpop.f32.mrf.mxu0
    %v130 = vadd.f32 %v110, %v129
    %131 = vmatmul.f32.gmra.mxu0 %v91
    %v132 = vpop.f32.mrf.mxu0
    %v133 = vadd.f32 %v110, %v132
    %134 = vdwg.mxu0
    %v135 = vmul.f32 %v130, 0.5
    %v136 = vmul.f32 %v133, 0.5
    %v137 = vmul.f32 %v130, 0.70710677
    %v138 = vmul.f32 %v133, 0.70710677
    %v139 = vmul.f32 %v137, %v137
    %v140 = vmin.f32 16.0, %v139
    %v141 = vmul.f32 %v140, 2.1237322e-06
    %v142 = vadd.f32 %v141, 0.00028619796
    %v143 = vmul.f32 %v140, %v142
    %v144 = vadd.f32 %v143, 0.0036580483
    %v145 = vmul.f32 %v140, %v144
    %v146 = vadd.f32 %v145, 0.05243302
    %v147 = vmul.f32 %v140, %v146
    %v148 = vadd.f32 %v147, 0.18741608
    %v149 = vmul.f32 %v140, %v148
    %v150 = vadd.f32 %v149, 1.1283791
    %v151 = vmul.f32 %v137, %v150
    %v152 = vmul.f32 %v140, 3.8918573e-05
    %v153 = vadd.f32 %v152, 0.001143296
    %v154 = vmul.f32 %v140, %v153
    %v155 = vadd.f32 %v154, 0.014752088
    %v156 = vmul.f32 %v140, %v155
    %v157 = vadd.f32 %v156, 0.112945676
    %v158 = vmul.f32 %v140, %v157
    %v159 = vadd.f32 %v158, 0.4994258
    %v160 = vmul.f32 %v140, %v159
    %v161 = vadd.f32 %v160, 1.0
    %v162 = vrcp.pop %v161
    %v163 = vmul.f32 %v161, %v162
    %v164 = vsub.f32 1.0, %v163
    %v165 = vmul.f32 %v162, %v164
    %v166 = vadd.f32 %v162, %v165
    %vm167 = vweird.f32 %v161
    %vm168 = vweird.f32 %v162
    %vm169 = vmor %vm167, %vm168
    %v170 = vsel %vm169, %v162, %v166
    %v171 = vand.u32 2147483647, %v161
    %vm172 = vcmp.eq.f32.partialorder %v171, 8.507059e+37
    %v173 = vand.u32 %v161, 2147483648
    %v174 = vor.u32 1.1754944e-38, %v173
    %v175 = vsel %vm172, %v174, %v170
    %v176 = vmul.f32 %v151, %v175
    %v177 = vmin.f32 %v176, 1.0
    %v178 = vmax.f32 %v177, -1.0
    %v179 = vmul.f32 %v138, %v138
    %v180 = vmin.f32 16.0, %v179
    %v181 = vmul.f32 %v180, 2.1237322e-06
    %v182 = vadd.f32 %v181, 0.00028619796
    %v183 = vmul.f32 %v180, %v182
    %v184 = vadd.f32 %v183, 0.0036580483
    %v185 = vmul.f32 %v180, %v184
    %v186 = vadd.f32 %v185, 0.05243302
    %v187 = vmul.f32 %v180, %v186
    %v188 = vadd.f32 %v187, 0.18741608
    %v189 = vmul.f32 %v180, %v188
    %v190 = vadd.f32 %v189, 1.1283791
    %v191 = vmul.f32 %v138, %v190
    %v192 = vmul.f32 %v180, 3.8918573e-05
    %v193 = vadd.f32 %v192, 0.001143296
    %v194 = vmul.f32 %v180, %v193
    %v195 = vadd.f32 %v194, 0.014752088
    %v196 = vmul.f32 %v180, %v195
    %v197 = vadd.f32 %v196, 0.112945676
    %v198 = vmul.f32 %v180, %v197
    %v199 = vadd.f32 %v198, 0.4994258
    %v200 = vmul.f32 %v180, %v199
    %v201 = vadd.f32 %v200, 1.0
    %v202 = vrcp.pop %v201
    %v203 = vmul.f32 %v201, %v202
    %v204 = vsub.f32 1.0, %v203
    %v205 = vmul.f32 %v202, %v204
    %v206 = vadd.f32 %v202, %v205
    %vm207 = vweird.f32 %v201
    %vm208 = vweird.f32 %v202
    %vm209 = vmor %vm207, %vm208
    %v210 = vsel %vm209, %v202, %v206
    %v211 = vand.u32 2147483647, %v201
    %vm212 = vcmp.eq.f32.partialorder %v211, 8.507059e+37
    %v213 = vand.u32 %v201, 2147483648
    %v214 = vor.u32 1.1754944e-38, %v213
    %v215 = vsel %vm212, %v214, %v210
    %v216 = vmul.f32 %v191, %v215
    %v217 = vmin.f32 %v216, 1.0
    %v218 = vmax.f32 %v217, -1.0
    %v219 = vadd.f32 %v178, 1.0
    %v220 = vadd.f32 %v218, 1.0
    %v221 = vmul.f32 %v135, %v219
    %v222 = vmul.f32 %v136, %v220
    %v223 = vld [vmem:[#allocation7] sm:$0xff]
    %v224 = vld [vmem:[#allocation7 + $0x8] sm:$0xff]
    %v225 = vld [vmem:[#allocation7 + $0x10] sm:$0xff]
    %v226 = vld [vmem:[#allocation7 + $0x18] sm:$0xff]
    %v227 = vld [vmem:[#allocation7 + $0x20] sm:$0xff]
    %v228 = vld [vmem:[#allocation7 + $0x28] sm:$0xff]
    %v229 = vld [vmem:[#allocation7 + $0x30] sm:$0xff]
    %v230 = vld [vmem:[#allocation7 + $0x38] sm:$0xff]
    %v231 = vld [vmem:[#allocation7 + $0x40] sm:$0xff]
    %v232 = vld [vmem:[#allocation7 + $0x48] sm:$0xff]
    %v233 = vld [vmem:[#allocation7 + $0x50] sm:$0xff]
    %v234 = vld [vmem:[#allocation7 + $0x58] sm:$0xff]
    %v235 = vld [vmem:[#allocation7 + $0x60] sm:$0xff]
    %v236 = vld [vmem:[#allocation7 + $0x68] sm:$0xff]
    %v237 = vld [vmem:[#allocation7 + $0x70] sm:$0xff]
    %v238 = vld [vmem:[#allocation7 + $0x78] sm:$0xff]
    %v239 = vld [vmem:[%s4] sm:$0x1]
    %v241 = vperm.slane %v239, 0
    %243 = vmatpush.msra.mxu0 %v238
    %244 = vmatpush.msra.mxu0 %v237
    %245 = vmatpush.msra.mxu0 %v236
    %246 = vmatpush.msra.mxu0 %v235
    %247 = vmatpush.msra.mxu0 %v234
    %248 = vmatpush.msra.mxu0 %v233
    %249 = vmatpush.msra.mxu0 %v232
    %250 = vmatpush.msra.mxu0 %v231
    %251 = vmatpush.msra.mxu0 %v230
    %252 = vmatpush.msra.mxu0 %v229
    %253 = vmatpush.msra.mxu0 %v228
    %254 = vmatpush.msra.mxu0 %v227
    %255 = vmatpush.msra.mxu0 %v226
    %256 = vmatpush.msra.mxu0 %v225
    %257 = vmatpush.msra.mxu0 %v224
    %258 = vmatpush.msra.mxu0 %v223
    %259 = vmatmul.f32.gmra.mxu0 %v221
    %v260 = vpop.f32.mrf.mxu0
    %v261 = vadd.f32 %v241, %v260
    %262 = vmatmul.f32.gmra.mxu0 %v222
    %v263 = vpop.f32.mrf.mxu0
    %v264 = vadd.f32 %v241, %v263
    %265 = vdwg.mxu0
    %v266 = vmul.f32 %v261, 0.5
    %v267 = vmul.f32 %v264, 0.5
    %v268 = vmul.f32 %v261, 0.70710677
    %v269 = vmul.f32 %v264, 0.70710677
    %v270 = vmul.f32 %v268, %v268
    %v271 = vmin.f32 16.0, %v270
    %v272 = vmul.f32 %v271, 2.1237322e-06
    %v273 = vadd.f32 %v272, 0.00028619796
    %v274 = vmul.f32 %v271, %v273
    %v275 = vadd.f32 %v274, 0.0036580483
    %v276 = vmul.f32 %v271, %v275
    %v277 = vadd.f32 %v276, 0.05243302
    %v278 = vmul.f32 %v271, %v277
    %v279 = vadd.f32 %v278, 0.18741608
    %v280 = vmul.f32 %v271, %v279
    %v281 = vadd.f32 %v280, 1.1283791
    %v282 = vmul.f32 %v268, %v281
    %v283 = vmul.f32 %v271, 3.8918573e-05
    %v284 = vadd.f32 %v283, 0.001143296
    %v285 = vmul.f32 %v271, %v284
    %v286 = vadd.f32 %v285, 0.014752088
    %v287 = vmul.f32 %v271, %v286
    %v288 = vadd.f32 %v287, 0.112945676
    %v289 = vmul.f32 %v271, %v288
    %v290 = vadd.f32 %v289, 0.4994258
    %v291 = vmul.f32 %v271, %v290
    %v292 = vadd.f32 %v291, 1.0
    %v293 = vrcp.pop %v292
    %v294 = vmul.f32 %v292, %v293
    %v295 = vsub.f32 1.0, %v294
    %v296 = vmul.f32 %v293, %v295
    %v297 = vadd.f32 %v293, %v296
    %vm298 = vweird.f32 %v292
    %vm299 = vweird.f32 %v293
    %vm300 = vmor %vm298, %vm299
    %v301 = vsel %vm300, %v293, %v297
    %v302 = vand.u32 2147483647, %v292
    %vm303 = vcmp.eq.f32.partialorder %v302, 8.507059e+37
    %v304 = vand.u32 %v292, 2147483648
    %v305 = vor.u32 1.1754944e-38, %v304
    %v306 = vsel %vm303, %v305, %v301
    %v307 = vmul.f32 %v282, %v306
    %v308 = vmin.f32 %v307, 1.0
    %v309 = vmax.f32 %v308, -1.0
    %v310 = vmul.f32 %v269, %v269
    %v311 = vmin.f32 16.0, %v310
    %v312 = vmul.f32 %v311, 2.1237322e-06
    %v313 = vadd.f32 %v312, 0.00028619796
    %v314 = vmul.f32 %v311, %v313
    %v315 = vadd.f32 %v314, 0.0036580483
    %v316 = vmul.f32 %v311, %v315
    %v317 = vadd.f32 %v316, 0.05243302
    %v318 = vmul.f32 %v311, %v317
    %v319 = vadd.f32 %v318, 0.18741608
    %v320 = vmul.f32 %v311, %v319
    %v321 = vadd.f32 %v320, 1.1283791
    %v322 = vmul.f32 %v269, %v321
    %v323 = vmul.f32 %v311, 3.8918573e-05
    %v324 = vadd.f32 %v323, 0.001143296
    %v325 = vmul.f32 %v311, %v324
    %v326 = vadd.f32 %v325, 0.014752088
    %v327 = vmul.f32 %v311, %v326
    %v328 = vadd.f32 %v327, 0.112945676
    %v329 = vmul.f32 %v311, %v328
    %v330 = vadd.f32 %v329, 0.4994258
    %v331 = vmul.f32 %v311, %v330
    %v332 = vadd.f32 %v331, 1.0
    %v333 = vrcp.pop %v332
    %v334 = vmul.f32 %v332, %v333
    %v335 = vsub.f32 1.0, %v334
    %v336 = vmul.f32 %v333, %v335
    %v337 = vadd.f32 %v333, %v336
    %vm338 = vweird.f32 %v332
    %vm339 = vweird.f32 %v333
    %vm340 = vmor %vm338, %vm339
    %v341 = vsel %vm340, %v333, %v337
    %v342 = vand.u32 2147483647, %v332
    %vm343 = vcmp.eq.f32.partialorder %v342, 8.507059e+37
    %v344 = vand.u32 %v332, 2147483648
    %v345 = vor.u32 1.1754944e-38, %v344
    %v346 = vsel %vm343, %v345, %v341
    %v347 = vmul.f32 %v322, %v346
    %v348 = vmin.f32 %v347, 1.0
    %v349 = vmax.f32 %v348, -1.0
    %v350 = vadd.f32 %v309, 1.0
    %v351 = vadd.f32 %v349, 1.0
    %v352 = vmul.f32 %v266, %v350
    %v353 = vmul.f32 %v267, %v351
    %v354 = vld [vmem:[#allocation8] sm:$0xff]
    %v355 = vld [vmem:[#allocation8 + $0x8] sm:$0xff]
    %v356 = vld [vmem:[#allocation8 + $0x10] sm:$0xff]
    %v357 = vld [vmem:[#allocation8 + $0x18] sm:$0xff]
    %v358 = vld [vmem:[#allocation8 + $0x20] sm:$0xff]
    %v359 = vld [vmem:[#allocation8 + $0x28] sm:$0xff]
    %v360 = vld [vmem:[#allocation8 + $0x30] sm:$0xff]
    %v361 = vld [vmem:[#allocation8 + $0x38] sm:$0xff]
    %v362 = vld [vmem:[#allocation8 + $0x40] sm:$0xff]
    %v363 = vld [vmem:[#allocation8 + $0x48] sm:$0xff]
    %v364 = vld [vmem:[#allocation8 + $0x50] sm:$0xff]
    %v365 = vld [vmem:[#allocation8 + $0x58] sm:$0xff]
    %v366 = vld [vmem:[#allocation8 + $0x60] sm:$0xff]
    %v367 = vld [vmem:[#allocation8 + $0x68] sm:$0xff]
    %v368 = vld [vmem:[#allocation8 + $0x70] sm:$0xff]
    %v369 = vld [vmem:[#allocation8 + $0x78] sm:$0xff]
    %v370 = vld [vmem:[%s6] sm:$0x1]
    %v372 = vperm.slane %v370, 0
    %374 = vmatpush.msra.mxu0 %v369
    %375 = vmatpush.msra.mxu0 %v368
    %376 = vmatpush.msra.mxu0 %v367
    %377 = vmatpush.msra.mxu0 %v366
    %378 = vmatpush.msra.mxu0 %v365
    %379 = vmatpush.msra.mxu0 %v364
    %380 = vmatpush.msra.mxu0 %v363
    %381 = vmatpush.msra.mxu0 %v362
    %382 = vmatpush.msra.mxu0 %v361
    %383 = vmatpush.msra.mxu0 %v360
    %384 = vmatpush.msra.mxu0 %v359
    %385 = vmatpush.msra.mxu0 %v358
    %386 = vmatpush.msra.mxu0 %v357
    %387 = vmatpush.msra.mxu0 %v356
    %388 = vmatpush.msra.mxu0 %v355
    %389 = vmatpush.msra.mxu0 %v354
    %390 = vmatmul.f32.gmra.mxu0 %v352
    %v391 = vpop.f32.mrf.mxu0
    %v392 = vadd.f32 %v372, %v391
    %393 = vmatmul.f32.gmra.mxu0 %v353
    %v394 = vpop.f32.mrf.mxu0
    %v395 = vadd.f32 %v372, %v394
    %396 = vdwg.mxu0
    %397 = vst [vmem:[#allocation10] sm:$0xff] %v392
    %398 = vst [vmem:[#allocation10 + $0x8] sm:$0xff] %v395
    // Predicated region
    $region46: #{tpu_custom_call.1} parent=1 // pred_check
      _
    $region47: #{tpu_custom_call.1} parent=1 // pred_check_branch
      %400 = sbr.rel (0) target = $region49
    $region48: #{tpu_custom_call.1} parent=1 // pred_region
      %402 = vsyncadd [#allocation4], 0
      %s403 = sshll.u32 [#allocation10], 4
      %s404 = int_to_ptr.vmem [resolvable:$true] %s403
      %s405 = sshll.u32 %s7, 4
      %s406 = int_to_ptr.hbm [resolvable:$true] %s405
      %411 = dma.vmem_to_hbm [thread:$0]  %s404, 256, %s406, [#allocation4], 128, 128, 8
    $region49: #{tpu_custom_call.1} parent=1 // pred_fallthru
      _
    // Predicated region
    $region50: #{tpu_custom_call.1} parent=1 // pred_check
      _
    $region51: #{tpu_custom_call.1} parent=1 // pred_check_branch
      %413 = sbr.rel (0) target = $region53
    $region52: #{tpu_custom_call.1} parent=1 // pred_region
      %415 = dma.done [#allocation4], 256
    $region53: #{tpu_custom_call.1} parent=1 // pred_fallthru
      _
    %416 = vsyncpa [#allocation3], 1
    %417 = vsyncpa [#allocation6], 1
    %418 = vsyncpa [#allocation9], 1
    %419 = vsyncpa [#allocation4], 1

</llo_original>
